<compile_context>
chip_gen: v5e
topology: v5e:2x2
jax: 0.10.0
libtpu: 0.0.40
codegen_flags: <defaults>
</compile_context>

<pallas_src>
import functools

import jax
import jax.numpy as jnp
from jax.experimental import pallas as pl
from jax.experimental.pallas import tpu as pltpu

_LANE = 128
_SUBLANE = 16  # multiple of 16 is safe for both f32 and bf16 blocks


def _detect_vmem_capacity_bytes():
    try:
        return int(pltpu.get_tpu_info().vmem_capacity_bytes)
    except Exception:
        return 64 * 1024 * 1024  # conservative fallback (v7x-sized)


_VMEM_CAP = _detect_vmem_capacity_bytes()
_SMALL_VMEM = _VMEM_CAP <= 64 * 1024 * 1024          # heuristic: v7x (2 TCs, 64 MiB)
_VMEM_LIMIT = min(int(_VMEM_CAP * 0.75), 100 * 1024 * 1024)
_VMEM_BUDGET = max(_VMEM_LIMIT - 8 * 1024 * 1024, 16 * 1024 * 1024)
_TM_CAP = 256 if _SMALL_VMEM else 1024               # bigger tiles on 128 MiB parts


def _pick_div_tile(dim: int, preferred: int, align: int) -> int:
    """Largest tile <= preferred that divides dim and is a multiple of align.

    Callers pad the tiled extent to a multiple of `align`, so for padded dims
    the fallback (full extent) only triggers when dim <= preferred anyway.
    """
    if dim <= preferred:
        return dim
    t = (preferred // align) * align
    while t >= align:
        if dim % t == 0:
            return t
        t -= align
    return dim


def _pad_rows(x, align):
    m = x.shape[0]
    m_pad = ((m + align - 1) // align) * align
    if m_pad == m:
        return x
    return jnp.pad(x, ((0, m_pad - m), (0, 0)))


def _gate_consts(temp):
    # CustomSigmoid: scale = temp + 1 if temp <= 1 else 2 ; divide by 10**temp
    scale = float(temp + 1) if temp <= 1 else 2.0
    inv_pow = float(10.0 ** (-temp))
    return scale, inv_pow


# --------------------------------------------------------------------------
# fused encoder layer (ONE pallas_call per layer):
#   h   = gelu(x @ W1 + b1)                      (bf16 matmul, f32 acc)
#   z2  = h @ W2 + b2
#   y   = LayerNorm(x + z2)                      (f32)
#   zg  = y @ Wg + bg                            (GateLayer, num_gate_layers=1)
#   g   = min(scale * sigmoid(zg / 10**temp), 1) (CustomSigmoid, tanh identity)
#   out = y * g
# LayerNorm needs the full E extent, so only M is tiled.
# --------------------------------------------------------------------------
def _encoder_layer_kernel(x_ref, w1_ref, b1_ref, w2_ref, b2_ref, gam_ref, bet_ref,
                          *rest, scale, inv_pow, eps, use_gate):
    if use_gate:
        wg_ref, bg_ref, o_ref = rest
    else:
        (o_ref,) = rest

    x = x_ref[...]                                              # f32 [TM, E]
    h = jnp.dot(x.astype(jnp.bfloat16), w1_ref[...],
                preferred_element_type=jnp.float32) + b1_ref[...]
    # TODO(synk): HF BERT uses exact erf GELU; tanh-approx GELU kept here since
    # erf has no guaranteed Mosaic lowering (the encoder is a stand-in anyway).
    h = jax.nn.gelu(h)
    z = jnp.dot(h.astype(jnp.bfloat16), w2_ref[...],
                preferred_element_type=jnp.float32) + b2_ref[...]
    y = x + z                                                   # residual (f32)
    mu = jnp.mean(y, axis=-1, keepdims=True)
    var = jnp.mean(jnp.square(y - mu), axis=-1, keepdims=True)
    y = (y - mu) * jax.lax.rsqrt(var + eps) * gam_ref[...] + bet_ref[...]
    if use_gate:
        zg = jnp.dot(y.astype(jnp.bfloat16), wg_ref[...],
                     preferred_element_type=jnp.float32) + bg_ref[...]
        # sigmoid(t) = 0.5 * (1 + tanh(t/2)): one EUP op instead of exp + recip.
        gate = scale * 0.5 * (1.0 + jnp.tanh(0.5 * zg * inv_pow))
        gate = jnp.minimum(gate, 1.0)                           # matches `out[out > 1] = 1`
        y = y * gate
    o_ref[...] = y.astype(o_ref.dtype)


def _plan_tm(M, E, n_weights):
    """VMEM-budget-driven row-tile size (intermediate-aware, generation-aware)."""
    itemsize_w = 2  # bf16 weights
    fixed = 2 * (n_weights * E * E * itemsize_w + 6 * E * 4)     # dbl-buffered weights/vecs
    per_row = 2 * (E * 4 + E * 4) + 6 * E * 4                    # dbl-buffered in/out + f32 temps
    tm_cap = max(_SUBLANE, (_VMEM_BUDGET - fixed) // max(per_row, 1))
    TM = _pick_div_tile(M, min(_TM_CAP, int(tm_cap)), _SUBLANE)
    # v7x has 2 TensorCores: make sure the parallel axis has >= 2 steps.
    if _SMALL_VMEM and M // TM < 2 and M >= 2 * _SUBLANE:
        TM = _pick_div_tile(M, M // 2, _SUBLANE)
    return TM


def encoder_layer(x2d, lyr, gate_wb, temp, eps=1e-12):
    M, E = x2d.shape
    use_gate = gate_wb is not None
    scale, inv_pow = _gate_consts(temp) if use_gate else (1.0, 1.0)

    TM = _plan_tm(M, E, n_weights=3 if use_gate else 2)

    row_spec = pl.BlockSpec((TM, E), lambda i: (i, 0))
    mat_spec = pl.BlockSpec((E, E), lambda i: (0, 0))
    vec_spec = pl.BlockSpec((1, E), lambda i: (0, 0))

    in_specs = [row_spec, mat_spec, vec_spec, mat_spec, vec_spec, vec_spec, vec_spec]
    args = [x2d, lyr["w1"], lyr["b1"], lyr["w2"], lyr["b2"], lyr["ln_g"], lyr["ln_b"]]
    if use_gate:
        in_specs += [mat_spec, vec_spec]
        args += [gate_wb[0], gate_wb[1]]

    kernel = functools.partial(_encoder_layer_kernel, scale=scale, inv_pow=inv_pow,
                               eps=eps, use_gate=use_gate)
    return pl.pallas_call(
        kernel,
        out_shape=jax.ShapeDtypeStruct((M, E), jnp.float32),
        grid=(M // TM,),
        in_specs=in_specs,
        out_specs=row_spec,
        compiler_params=pltpu.CompilerParams(
            dimension_semantics=("parallel",),
            vmem_limit_bytes=_VMEM_LIMIT,
        ),
    )(*args)


# --------------------------------------------------------------------------
# fused pooler + final gate:
#   pooled = tanh(cls @ Wp + bp)
#   g      = min(scale * sigmoid((pooled @ Wg + bg) / 10**temp), 1)
#   out    = pooled * g
# --------------------------------------------------------------------------
def _pooler_kernel(cls_ref, wp_ref, bp_ref, *rest, scale, inv_pow, use_gate):
    if use_gate:
        wg_ref, bg_ref, o_ref = rest
    else:
        (o_ref,) = rest
    x = cls_ref[...].astype(jnp.bfloat16)
    pooled = jnp.tanh(
        jnp.dot(x, wp_ref[...], preferred_element_type=jnp.float32) + bp_ref[...])
    if use_gate:
        zg = jnp.dot(pooled.astype(jnp.bfloat16), wg_ref[...],
                     preferred_element_type=jnp.float32) + bg_ref[...]
        gate = scale * 0.5 * (1.0 + jnp.tanh(0.5 * zg * inv_pow))
        gate = jnp.minimum(gate, 1.0)
        pooled = pooled * gate
    o_ref[...] = pooled.astype(o_ref.dtype)


def pooler(cls, wp, bp, gate_wb, temp):
    B, E = cls.shape
    use_gate = gate_wb is not None
    scale, inv_pow = _gate_consts(temp) if use_gate else (1.0, 1.0)

    TM = _plan_tm(B, E, n_weights=2 if use_gate else 1)

    row_spec = pl.BlockSpec((TM, E), lambda i: (i, 0))
    mat_spec = pl.BlockSpec((E, E), lambda i: (0, 0))
    vec_spec = pl.BlockSpec((1, E), lambda i: (0, 0))

    in_specs = [row_spec, mat_spec, vec_spec]
    args = [cls, wp, bp]
    if use_gate:
        in_specs += [mat_spec, vec_spec]
        args += [gate_wb[0], gate_wb[1]]

    kernel = functools.partial(_pooler_kernel, scale=scale, inv_pow=inv_pow,
                               use_gate=use_gate)
    return pl.pallas_call(
        kernel,
        out_shape=jax.ShapeDtypeStruct((B, E), jnp.float32),
        grid=(B // TM,),
        in_specs=in_specs,
        out_specs=row_spec,
        compiler_params=pltpu.CompilerParams(
            dimension_semantics=("parallel",),
            vmem_limit_bytes=_VMEM_LIMIT,
        ),
    )(*args)


# --------------------------------------------------------------------------
# plain-JAX glue (stand-in BERT pieces + parameter setup)
# --------------------------------------------------------------------------
def layernorm(x, gamma, beta, eps=1e-12):
    mu = jnp.mean(x, axis=-1, keepdims=True)
    var = jnp.mean((x - mu) ** 2, axis=-1, keepdims=True)
    return (x - mu) * jax.lax.rsqrt(var + eps) * gamma + beta


def init_params(key, vocab, seq, embed, classes, num_layers, tgt_gate):
    def nrm(k, shape, s=0.05, dtype=jnp.float32):
        return (jax.random.normal(k, shape, jnp.float32) * s).astype(dtype)

    keys = iter(jax.random.split(key, 64))
    p = {
        "word_emb": nrm(next(keys), (vocab, embed)),
        "pos_emb": nrm(next(keys), (seq, embed)),
        "type_emb": nrm(next(keys), (2, embed)),
        "emb_ln": (jnp.ones((embed,), jnp.float32), jnp.zeros((embed,), jnp.float32)),
        "enc": [],
        "gate": {name: [] for name in tgt_gate if name != "none"},
        "pooler": (nrm(next(keys), (embed, embed), dtype=jnp.bfloat16),
                   jnp.zeros((1, embed), jnp.float32)),
        "fc": (nrm(next(keys), (embed, classes)),
               jnp.zeros((classes,), jnp.float32)),
    }
    for _ in range(num_layers):
        p["enc"].append(
            dict(
                w1=nrm(next(keys), (embed, embed), dtype=jnp.bfloat16),
                b1=jnp.zeros((1, embed), jnp.float32),
                w2=nrm(next(keys), (embed, embed), dtype=jnp.bfloat16),
                b2=jnp.zeros((1, embed), jnp.float32),
                ln_g=jnp.ones((1, embed), jnp.float32),
                ln_b=jnp.zeros((1, embed), jnp.float32),
            )
        )
    for name in p["gate"]:
        for _ in range(num_layers + 1):  # one gate per encoder layer + one for pooled output
            p["gate"][name].append(
                (nrm(next(keys), (embed, embed), dtype=jnp.bfloat16),
                 jnp.zeros((1, embed), jnp.float32))
            )
    return p


def _gate_temps(tgt_gate, active_gates, temp):
    # Mirrors BertGateV1.forward_gate temp selection (substring test on the
    # active_gates string, exactly as the torch code does).
    temps = []
    counter = 0
    for name in tgt_gate:
        if name in active_gates:
            temps.append(temp[counter])
            counter += 1
        else:
            temps.append(4)
    return temps


def bert_gate_v1_forward(params, input_ids, token_type_ids, attention_mask,
                         active_gates="gender age", temp=(0,),
                         tgt_gate=("gender",)):
    B, S = input_ids.shape
    E = params["word_emb"].shape[1]
    M = B * S

    # --- stand-in bert.embeddings (gather + LN kept as plain-JAX glue) ---
    x = (params["word_emb"][input_ids]
         + params["pos_emb"][None, :, :]
         + params["type_emb"][token_type_ids])
    x = layernorm(x, *params["emb_ln"])
    x2d = _pad_rows(x.reshape(M, E).astype(jnp.float32), _SUBLANE)

    use_gate = "none" not in tgt_gate
    temps = _gate_temps(tgt_gate, active_gates, temp) if use_gate else []
    # TODO(synk): only the first target-attribute gate is fused; multi-attribute
    # gate products (len(tgt_gate) > 1) would need extra gate kernels on the
    # pre-gate activations (module default target_attribute='gender' is single).
    gname = tgt_gate[0] if use_gate else None

    # --- stand-in encoder: one fully fused pallas_call per layer -----------
    for i, lyr in enumerate(params["enc"]):
        gate_wb = params["gate"][gname][i] if use_gate else None
        x2d = encoder_layer(x2d, lyr, gate_wb, temps[0] if use_gate else 0)

    # --- stand-in pooler: tanh(Linear(x[:, 0])) fused with the final gate ---
    cls = x2d[:M].reshape(B, S, E)[:, 0, :]
    gate_wb = params["gate"][gname][-1] if use_gate else None
    pooled = pooler(cls, params["pooler"][0], params["pooler"][1],
                    gate_wb, temps[0] if use_gate else 0)

    # --- classifier head: N=num_classes is tiny (lane-sparse) -> plain JAX ---
    out = pooled @ params["fc"][0] + params["fc"][1]
    return out


if __name__ == "__main__":
    # E kept a multiple of 128 so every block is lane-dense (review item).
    B, S, E, C = 2, 8, 128, 3
    NUM_ENC_LAYERS, VOCAB = 2, 30
    TGT_GATE = ("gender",)  # target_attribute='gender' (module default)

    key = jax.random.PRNGKey(0)
    kp, ki = jax.random.split(key)
    params = init_params(kp, VOCAB, S, E, C, NUM_ENC_LAYERS, TGT_GATE)

    input_ids = jax.random.randint(ki, (B, S), 0, VOCAB, dtype=jnp.int32)
    token_type_ids = jnp.zeros((B, S), jnp.int32)
    attention_mask = jnp.ones((B, S), jnp.int32)  # stand-in encoder ignores it

    out = bert_gate_v1_forward(params, input_ids, token_type_ids, attention_mask,
                               active_gates="gender age", temp=(0,),
                               tgt_gate=TGT_GATE)
    jax.block_until_ready(out)
    assert out.shape == (B, C)
    print("KERNEL_OK")
</pallas_src>

<mosaic_0001>
module attributes {stable_mosaic.version = 11 : i64} {
  func.func @_encoder_layer_kernel(%arg0: i32, %arg1: memref<16x128xf32, #tpu.memory_space<vmem>>, %arg2: memref<128x128xbf16, #tpu.memory_space<vmem>>, %arg3: memref<1x128xf32, #tpu.memory_space<vmem>>, %arg4: memref<128x128xbf16, #tpu.memory_space<vmem>>, %arg5: memref<1x128xf32, #tpu.memory_space<vmem>>, %arg6: memref<1x128xf32, #tpu.memory_space<vmem>>, %arg7: memref<1x128xf32, #tpu.memory_space<vmem>>, %arg8: memref<128x128xbf16, #tpu.memory_space<vmem>>, %arg9: memref<1x128xf32, #tpu.memory_space<vmem>>, %arg10: memref<16x128xf32, #tpu.memory_space<vmem>>) attributes {dimension_semantics = [#tpu.dimension_semantics<parallel>], iteration_bounds = array<i64: 1>, scalar_prefetch = 0 : i64, scratch_operands = 0 : i64, tpu.core_type = #tpu.core_type<tc>, window_params = [{transform_indices = @transform_0, window_bounds = array<i64: 16, 128>}, {pipeline_mode = #tpu.pipeline_mode<synchronous>, transform_indices = @transform_1, window_bounds = array<i64: 128, 128>}, {pipeline_mode = #tpu.pipeline_mode<synchronous>, transform_indices = @transform_2, window_bounds = array<i64: 1, 128>}, {pipeline_mode = #tpu.pipeline_mode<synchronous>, transform_indices = @transform_3, window_bounds = array<i64: 128, 128>}, {pipeline_mode = #tpu.pipeline_mode<synchronous>, transform_indices = @transform_4, window_bounds = array<i64: 1, 128>}, {pipeline_mode = #tpu.pipeline_mode<synchronous>, transform_indices = @transform_5, window_bounds = array<i64: 1, 128>}, {pipeline_mode = #tpu.pipeline_mode<synchronous>, transform_indices = @transform_6, window_bounds = array<i64: 1, 128>}, {pipeline_mode = #tpu.pipeline_mode<synchronous>, transform_indices = @transform_7, window_bounds = array<i64: 128, 128>}, {pipeline_mode = #tpu.pipeline_mode<synchronous>, transform_indices = @transform_8, window_bounds = array<i64: 1, 128>}, {transform_indices = @transform_9, window_bounds = array<i64: 16, 128>}]} {
    %c0 = arith.constant 0 : index
    %c0_0 = arith.constant 0 : index
    %0 = vector.load %arg1[%c0, %c0_0] : memref<16x128xf32, #tpu.memory_space<vmem>>, vector<16x128xf32>
    %1 = arith.truncf %0 : vector<16x128xf32> to vector<16x128xbf16>
    %c0_1 = arith.constant 0 : index
    %c0_2 = arith.constant 0 : index
    %2 = vector.load %arg2[%c0_1, %c0_2] : memref<128x128xbf16, #tpu.memory_space<vmem>>, vector<128x128xbf16>
    %cst = arith.constant dense<0.000000e+00> : vector<16x128xf32>
    %3 = tpu.matmul %1, %2, %cst {dimension_numbers = #tpu.dot_dimension_numbers<[1], [0], [0], [1], [0, 0, 1, 1], [], []>} : vector<16x128xbf16>, vector<128x128xbf16>, vector<16x128xf32> -> vector<16x128xf32>
    %c0_3 = arith.constant 0 : index
    %c0_4 = arith.constant 0 : index
    %4 = vector.load %arg3[%c0_3, %c0_4] : memref<1x128xf32, #tpu.memory_space<vmem>>, vector<1x128xf32>
    %5 = vector.broadcast %4 : vector<1x128xf32> to vector<16x128xf32>
    %6 = arith.addf %3, %5 : vector<16x128xf32>
    %7 = arith.mulf %6, %6 : vector<16x128xf32>
    %8 = arith.mulf %6, %7 : vector<16x128xf32>
    %cst_5 = arith.constant 4.471500e-02 : f32
    %9 = vector.broadcast %cst_5 : f32 to vector<16x128xf32>
    %10 = arith.mulf %9, %8 : vector<16x128xf32>
    %11 = arith.addf %6, %10 : vector<16x128xf32>
    %cst_6 = arith.constant 0.797884583 : f32
    %12 = vector.broadcast %cst_6 : f32 to vector<16x128xf32>
    %13 = arith.mulf %12, %11 : vector<16x128xf32>
    %14 = math.tanh %13 : vector<16x128xf32>
    %cst_7 = arith.constant 1.000000e+00 : f32
    %15 = vector.broadcast %cst_7 : f32 to vector<16x128xf32>
    %16 = arith.addf %15, %14 : vector<16x128xf32>
    %cst_8 = arith.constant 5.000000e-01 : f32
    %17 = vector.broadcast %cst_8 : f32 to vector<16x128xf32>
    %18 = arith.mulf %17, %16 : vector<16x128xf32>
    %19 = arith.mulf %6, %18 : vector<16x128xf32>
    %20 = arith.truncf %19 : vector<16x128xf32> to vector<16x128xbf16>
    %c0_9 = arith.constant 0 : index
    %c0_10 = arith.constant 0 : index
    %21 = vector.load %arg4[%c0_9, %c0_10] : memref<128x128xbf16, #tpu.memory_space<vmem>>, vector<128x128xbf16>
    %cst_11 = arith.constant dense<0.000000e+00> : vector<16x128xf32>
    %22 = tpu.matmul %20, %21, %cst_11 {dimension_numbers = #tpu.dot_dimension_numbers<[1], [0], [0], [1], [0, 0, 1, 1], [], []>} : vector<16x128xbf16>, vector<128x128xbf16>, vector<16x128xf32> -> vector<16x128xf32>
    %c0_12 = arith.constant 0 : index
    %c0_13 = arith.constant 0 : index
    %23 = vector.load %arg5[%c0_12, %c0_13] : memref<1x128xf32, #tpu.memory_space<vmem>>, vector<1x128xf32>
    %24 = vector.broadcast %23 : vector<1x128xf32> to vector<16x128xf32>
    %25 = arith.addf %22, %24 : vector<16x128xf32>
    %26 = arith.addf %0, %25 : vector<16x128xf32>
    %cst_14 = arith.constant dense<0.000000e+00> : vector<16xf32>
    %27 = vector.multi_reduction <add>, %26, %cst_14 [1] : vector<16x128xf32> to vector<16xf32>
    %28 = vector.shape_cast %27 : vector<16xf32> to vector<16x1xf32>
    %cst_15 = arith.constant 1.280000e+02 : f32
    %29 = vector.broadcast %cst_15 : f32 to vector<16x1xf32>
    %30 = arith.divf %28, %29 : vector<16x1xf32>
    %31 = vector.broadcast %30 : vector<16x1xf32> to vector<16x128xf32>
    %32 = arith.subf %26, %31 : vector<16x128xf32>
    %33 = arith.mulf %32, %32 : vector<16x128xf32>
    %cst_16 = arith.constant dense<0.000000e+00> : vector<16xf32>
    %34 = vector.multi_reduction <add>, %33, %cst_16 [1] : vector<16x128xf32> to vector<16xf32>
    %35 = vector.shape_cast %34 : vector<16xf32> to vector<16x1xf32>
    %cst_17 = arith.constant 1.280000e+02 : f32
    %36 = vector.broadcast %cst_17 : f32 to vector<16x1xf32>
    %37 = arith.divf %35, %36 : vector<16x1xf32>
    %38 = vector.broadcast %30 : vector<16x1xf32> to vector<16x128xf32>
    %39 = arith.subf %26, %38 : vector<16x128xf32>
    %cst_18 = arith.constant 9.99999996E-13 : f32
    %40 = vector.broadcast %cst_18 : f32 to vector<16x1xf32>
    %41 = arith.addf %37, %40 : vector<16x1xf32>
    %42 = math.rsqrt %41 : vector<16x1xf32>
    %43 = vector.broadcast %42 : vector<16x1xf32> to vector<16x128xf32>
    %44 = arith.mulf %39, %43 : vector<16x128xf32>
    %c0_19 = arith.constant 0 : index
    %c0_20 = arith.constant 0 : index
    %45 = vector.load %arg6[%c0_19, %c0_20] : memref<1x128xf32, #tpu.memory_space<vmem>>, vector<1x128xf32>
    %46 = vector.broadcast %45 : vector<1x128xf32> to vector<16x128xf32>
    %47 = arith.mulf %44, %46 : vector<16x128xf32>
    %c0_21 = arith.constant 0 : index
    %c0_22 = arith.constant 0 : index
    %48 = vector.load %arg7[%c0_21, %c0_22] : memref<1x128xf32, #tpu.memory_space<vmem>>, vector<1x128xf32>
    %49 = vector.broadcast %48 : vector<1x128xf32> to vector<16x128xf32>
    %50 = arith.addf %47, %49 : vector<16x128xf32>
    %51 = arith.truncf %50 : vector<16x128xf32> to vector<16x128xbf16>
    %c0_23 = arith.constant 0 : index
    %c0_24 = arith.constant 0 : index
    %52 = vector.load %arg8[%c0_23, %c0_24] : memref<128x128xbf16, #tpu.memory_space<vmem>>, vector<128x128xbf16>
    %cst_25 = arith.constant dense<0.000000e+00> : vector<16x128xf32>
    %53 = tpu.matmul %51, %52, %cst_25 {dimension_numbers = #tpu.dot_dimension_numbers<[1], [0], [0], [1], [0, 0, 1, 1], [], []>} : vector<16x128xbf16>, vector<128x128xbf16>, vector<16x128xf32> -> vector<16x128xf32>
    %c0_26 = arith.constant 0 : index
    %c0_27 = arith.constant 0 : index
    %54 = vector.load %arg9[%c0_26, %c0_27] : memref<1x128xf32, #tpu.memory_space<vmem>>, vector<1x128xf32>
    %55 = vector.broadcast %54 : vector<1x128xf32> to vector<16x128xf32>
    %56 = arith.addf %53, %55 : vector<16x128xf32>
    %cst_28 = arith.constant 5.000000e-01 : f32
    %57 = vector.broadcast %cst_28 : f32 to vector<16x128xf32>
    %58 = arith.mulf %57, %56 : vector<16x128xf32>
    %cst_29 = arith.constant 1.000000e+00 : f32
    %59 = vector.broadcast %cst_29 : f32 to vector<16x128xf32>
    %60 = arith.mulf %58, %59 : vector<16x128xf32>
    %61 = math.tanh %60 : vector<16x128xf32>
    %cst_30 = arith.constant 1.000000e+00 : f32
    %62 = vector.broadcast %cst_30 : f32 to vector<16x128xf32>
    %63 = arith.addf %62, %61 : vector<16x128xf32>
    %cst_31 = arith.constant 5.000000e-01 : f32
    %64 = vector.broadcast %cst_31 : f32 to vector<16x128xf32>
    %65 = arith.mulf %64, %63 : vector<16x128xf32>
    %cst_32 = arith.constant 1.000000e+00 : f32
    %66 = vector.broadcast %cst_32 : f32 to vector<16x128xf32>
    %67 = arith.minimumf %65, %66 : vector<16x128xf32>
    %68 = arith.mulf %50, %67 : vector<16x128xf32>
    %c0_33 = arith.constant 0 : index
    %c0_34 = arith.constant 0 : index
    %69 = vector.load %arg10[%c0_33, %c0_34] : memref<16x128xf32, #tpu.memory_space<vmem>>, vector<16x128xf32>
    tpu.vector_store %arg10[%c0_33, %c0_34], %68 {strides = array<i32>} : memref<16x128xf32, #tpu.memory_space<vmem>>, vector<16x128xf32>,
    return
  }
  func.func @transform_0(%arg0: i32) -> (i32, i32) {
    %c0_i32 = arith.constant 0 : i32
    %c0_i32_0 = arith.constant 0 : i32
    return %arg0, %c0_i32 : i32, i32
  }
  func.func @transform_1(%arg0: i32) -> (i32, i32) {
    %c0_i32 = arith.constant 0 : i32
    %c0_i32_0 = arith.constant 0 : i32
    %c0_i32_1 = arith.constant 0 : i32
    return %c0_i32, %c0_i32_0 : i32, i32
  }
  func.func @transform_2(%arg0: i32) -> (i32, i32) {
    %c0_i32 = arith.constant 0 : i32
    %c0_i32_0 = arith.constant 0 : i32
    %c0_i32_1 = arith.constant 0 : i32
    return %c0_i32, %c0_i32_0 : i32, i32
  }
  func.func @transform_3(%arg0: i32) -> (i32, i32) {
    %c0_i32 = arith.constant 0 : i32
    %c0_i32_0 = arith.constant 0 : i32
    %c0_i32_1 = arith.constant 0 : i32
    return %c0_i32, %c0_i32_0 : i32, i32
  }
  func.func @transform_4(%arg0: i32) -> (i32, i32) {
    %c0_i32 = arith.constant 0 : i32
    %c0_i32_0 = arith.constant 0 : i32
    %c0_i32_1 = arith.constant 0 : i32
    return %c0_i32, %c0_i32_0 : i32, i32
  }
  func.func @transform_5(%arg0: i32) -> (i32, i32) {
    %c0_i32 = arith.constant 0 : i32
    %c0_i32_0 = arith.constant 0 : i32
    %c0_i32_1 = arith.constant 0 : i32
    return %c0_i32, %c0_i32_0 : i32, i32
  }
  func.func @transform_6(%arg0: i32) -> (i32, i32) {
    %c0_i32 = arith.constant 0 : i32
    %c0_i32_0 = arith.constant 0 : i32
    %c0_i32_1 = arith.constant 0 : i32
    return %c0_i32, %c0_i32_0 : i32, i32
  }
  func.func @transform_7(%arg0: i32) -> (i32, i32) {
    %c0_i32 = arith.constant 0 : i32
    %c0_i32_0 = arith.constant 0 : i32
    %c0_i32_1 = arith.constant 0 : i32
    return %c0_i32, %c0_i32_0 : i32, i32
  }
  func.func @transform_8(%arg0: i32) -> (i32, i32) {
    %c0_i32 = arith.constant 0 : i32
    %c0_i32_0 = arith.constant 0 : i32
    %c0_i32_1 = arith.constant 0 : i32
    return %c0_i32, %c0_i32_0 : i32, i32
  }
  func.func @transform_9(%arg0: i32) -> (i32, i32) {
    %c0_i32 = arith.constant 0 : i32
    %c0_i32_0 = arith.constant 0 : i32
    return %arg0, %c0_i32 : i32, i32
  }
}

</mosaic_0001>

<llo_original>
// kernel: tpu_custom_call.1
$region0: #{tpu_custom_call.1}
  #allocation0 [shape = 'u32[]', space=smem, size = 0x4, offset = 0x4, fixed_abs, tag = 'smem constant byte address 0x4 - core index']
  #allocation1 [shape = 'u32[72,128]{1,0:T(1,128)}', space=vmem, size = 0x9000, scoped, tag = 'internal scratch']
  %s0 = inlined_call_operand.hbm [shape: f32[16,128], index: 0, kind: input, shape index: {}]
  %s1 = inlined_call_operand.hbm [shape: bf16[128,128], index: 1, kind: input, shape index: {}]
  %s2 = inlined_call_operand.vmem [shape: f32[1,128], index: 2, kind: input, shape index: {}]
  %s3 = inlined_call_operand.hbm [shape: bf16[128,128], index: 3, kind: input, shape index: {}]
  %s4 = inlined_call_operand.vmem [shape: f32[1,128], index: 4, kind: input, shape index: {}]
  %s5 = inlined_call_operand.vmem [shape: f32[1,128], index: 5, kind: input, shape index: {}]
  %s6 = inlined_call_operand.vmem [shape: f32[1,128], index: 6, kind: input, shape index: {}]
  %s7 = inlined_call_operand.hbm [shape: bf16[128,128], index: 7, kind: input, shape index: {}]
  %s8 = inlined_call_operand.vmem [shape: f32[1,128], index: 8, kind: input, shape index: {}]
  %s9 = inlined_call_operand.hbm [shape: f32[16,128], index: 9, kind: output, shape index: {}]
  %s10 = sld [smem:[#allocation0]]
  $region62: #{tpu_custom_call.1} parent=0
    _
  %s12 = ssub.s32 1, %s10
  %s13 = scalar_select 0, %s12, %s10
  $region1: #{tpu_custom_call.1} parent=0
    #allocation2 [shape = 'u8[8192]{0}', space=vmem, size = 0x2000, scoped, tag = 'input window, operand 0, single buffered']
    #allocation3 [shape = 's32[1]{0}', space=sflag, size = 0x4, scoped, tag = 'scoped memory for tpu_custom_call.1']
    #allocation4 [shape = 's32[1]{0}', space=sflag, size = 0x4, scoped, tag = 'scoped memory for tpu_custom_call.1']
    #allocation5 [shape = 'u8[32768]{0}', space=vmem, size = 0x8000, scoped, tag = 'input window, operand 1, single buffered']
    #allocation6 [shape = 's32[1]{0}', space=sflag, size = 0x4, scoped, tag = 'scoped memory for tpu_custom_call.1']
    #allocation7 [shape = 'u8[32768]{0}', space=vmem, size = 0x8000, scoped, tag = 'input window, operand 3, single buffered']
    #allocation8 [shape = 'u8[32768]{0}', space=vmem, size = 0x8000, scoped, tag = 'input window, operand 7, single buffered']
    #allocation9 [shape = 's32[1]{0}', space=sflag, size = 0x4, scoped, tag = 'scoped memory for tpu_custom_call.1']
    #allocation10 [shape = 'u8[8192]{0}', space=vmem, size = 0x2000, scoped, tag = 'output window, operand 0, single buffered']
    %14 = vsyncpa [#allocation3], 0
    %15 = vsyncpa [#allocation6], 0
    %16 = vsyncpa [#allocation9], 0
    %17 = vsyncpa [#allocation4], 0
    // Predicated region
    $region2: #{tpu_custom_call.1} parent=1 // pred_check
      _
    $region3: #{tpu_custom_call.1} parent=1 // pred_check_branch
      %19 = sbr.rel (0) target = $region5
    $region4: #{tpu_custom_call.1} parent=1 // pred_region
      %21 = vsyncadd [#allocation3], 0
      %s22 = sshll.u32 %s0, 4
      %s23 = int_to_ptr.hbm [resolvable:$true] %s22
      %s24 = sshll.u32 [#allocation2], 4
      %s25 = int_to_ptr.vmem [resolvable:$true] %s24
      %30 = dma.hbm_to_vmem [thread:$0]  %s23, 256, %s25, [#allocation3], 128, 128, 8
    $region5: #{tpu_custom_call.1} parent=1 // pred_fallthru
      _
    // Predicated region
    $region6: #{tpu_custom_call.1} parent=1 // pred_check
      _
    $region7: #{tpu_custom_call.1} parent=1 // pred_check_branch
      %32 = sbr.rel (0) target = $region9
    $region8: #{tpu_custom_call.1} parent=1 // pred_region
      %34 = vsyncadd [#allocation6], 0
      %s35 = sshll.u32 %s1, 4
      %s36 = int_to_ptr.hbm [resolvable:$true] %s35
      %s37 = sshll.u32 [#allocation5], 4
      %s38 = int_to_ptr.vmem [resolvable:$true] %s37
      %43 = dma.hbm_to_vmem [thread:$0]  %s36, 1024, %s38, [#allocation6], 64, 64, 4
    $region9: #{tpu_custom_call.1} parent=1 // pred_fallthru
      _
    // Predicated region
    $region10: #{tpu_custom_call.1} parent=1 // pred_check
      _
    $region11: #{tpu_custom_call.1} parent=1 // pred_check_branch
      %45 = sbr.rel (0) target = $region13
    $region12: #{tpu_custom_call.1} parent=1 // pred_region
      _
    $region13: #{tpu_custom_call.1} parent=1 // pred_fallthru
      _
    // Predicated region
    $region14: #{tpu_custom_call.1} parent=1 // pred_check
      _
    $region15: #{tpu_custom_call.1} parent=1 // pred_check_branch
      %47 = sbr.rel (0) target = $region17
    $region16: #{tpu_custom_call.1} parent=1 // pred_region
      %49 = vsyncadd [#allocation6], 0
      %s50 = sshll.u32 %s3, 4
      %s51 = int_to_ptr.hbm [resolvable:$true] %s50
      %s52 = sshll.u32 [#allocation7], 4
      %s53 = int_to_ptr.vmem [resolvable:$true] %s52
      %58 = dma.hbm_to_vmem [thread:$0]  %s51, 1024, %s53, [#allocation6], 64, 64, 4
    $region17: #{tpu_custom_call.1} parent=1 // pred_fallthru
      _
    // Predicated region
    $region18: #{tpu_custom_call.1} parent=1 // pred_check
      _
    $region19: #{tpu_custom_call.1} parent=1 // pred_check_branch
      %60 = sbr.rel (0) target = $region21
    $region20: #{tpu_custom_call.1} parent=1 // pred_region
      _
    $region21: #{tpu_custom_call.1} parent=1 // pred_fallthru
      _
    // Predicated region
    $region22: #{tpu_custom_call.1} parent=1 // pred_check
      _
    $region23: #{tpu_custom_call.1} parent=1 // pred_check_branch
      %62 = sbr.rel (0) target = $region25
    $region24: #{tpu_custom_call.1} parent=1 // pred_region
      _
    $region25: #{tpu_custom_call.1} parent=1 // pred_fallthru
      _
    // Predicated region
    $region26: #{tpu_custom_call.1} parent=1 // pred_check
      _
    $region27: #{tpu_custom_call.1} parent=1 // pred_check_branch
      %64 = sbr.rel (0) target = $region29
    $region28: #{tpu_custom_call.1} parent=1 // pred_region
      _
    $region29: #{tpu_custom_call.1} parent=1 // pred_fallthru
      _
    // Predicated region
    $region30: #{tpu_custom_call.1} parent=1 // pred_check
      _
    $region31: #{tpu_custom_call.1} parent=1 // pred_check_branch
      %66 = sbr.rel (0) target = $region33
    $region32: #{tpu_custom_call.1} parent=1 // pred_region
      %68 = vsyncadd [#allocation9], 0
      %s69 = sshll.u32 %s7, 4
      %s70 = int_to_ptr.hbm [resolvable:$true] %s69
      %s71 = sshll.u32 [#allocation8], 4
      %s72 = int_to_ptr.vmem [resolvable:$true] %s71
      %77 = dma.hbm_to_vmem [thread:$0]  %s70, 1024, %s72, [#allocation9], 64, 64, 4
    $region33: #{tpu_custom_call.1} parent=1 // pred_fallthru
      _
    // Predicated region
    $region34: #{tpu_custom_call.1} parent=1 // pred_check
      _
    $region35: #{tpu_custom_call.1} parent=1 // pred_check_branch
      %79 = sbr.rel (0) target = $region37
    $region36: #{tpu_custom_call.1} parent=1 // pred_region
      _
    $region37: #{tpu_custom_call.1} parent=1 // pred_fallthru
      _
    // Predicated region
    $region38: #{tpu_custom_call.1} parent=1 // pred_check
      _
    $region39: #{tpu_custom_call.1} parent=1 // pred_check_branch
      %81 = sbr.rel (0) target = $region41
    $region40: #{tpu_custom_call.1} parent=1 // pred_region
      %83 = dma.done [#allocation3], 256
    $region41: #{tpu_custom_call.1} parent=1 // pred_fallthru
      _
    // Predicated region
    $region42: #{tpu_custom_call.1} parent=1 // pred_check
      _
    $region43: #{tpu_custom_call.1} parent=1 // pred_check_branch
      %85 = sbr.rel (0) target = $region45
    $region44: #{tpu_custom_call.1} parent=1 // pred_region
      %87 = dma.done [#allocation6], 1024
    $region45: #{tpu_custom_call.1} parent=1 // pred_fallthru
      _
    // Predicated region
    $region46: #{tpu_custom_call.1} parent=1 // pred_check
      _
    $region47: #{tpu_custom_call.1} parent=1 // pred_check_branch
      %89 = sbr.rel (0) target = $region49
    $region48: #{tpu_custom_call.1} parent=1 // pred_region
      %91 = dma.done [#allocation6], 1024
    $region49: #{tpu_custom_call.1} parent=1 // pred_fallthru
      _
    // Predicated region
    $region50: #{tpu_custom_call.1} parent=1 // pred_check
      _
    $region51: #{tpu_custom_call.1} parent=1 // pred_check_branch
      %93 = sbr.rel (0) target = $region53
    $region52: #{tpu_custom_call.1} parent=1 // pred_region
      %95 = dma.done [#allocation9], 1024
    $region53: #{tpu_custom_call.1} parent=1 // pred_fallthru
      _
    %v96 = vld [vmem:[#allocation2] sm:$0xff]
    %v97 = vld [vmem:[#allocation2 + $0x8] sm:$0xff]
    %v98 = vpack.c.bf16 %v97, %v96
    %v99 = vld [vmem:[#allocation5] sm:$0xf]
    %v100 = vld [vmem:[#allocation5 + $0x4] sm:$0xf]
    %v101 = vld [vmem:[#allocation5 + $0x8] sm:$0xf]
    %v102 = vld [vmem:[#allocation5 + $0xc] sm:$0xf]
    %v103 = vld [vmem:[#allocation5 + $0x10] sm:$0xf]
    %v104 = vld [vmem:[#allocation5 + $0x14] sm:$0xf]
    %v105 = vld [vmem:[#allocation5 + $0x18] sm:$0xf]
    %v106 = vld [vmem:[#allocation5 + $0x1c] sm:$0xf]
    %v107 = vld [vmem:[#allocation5 + $0x20] sm:$0xf]
    %v108 = vld [vmem:[#allocation5 + $0x24] sm:$0xf]
    %v109 = vld [vmem:[#allocation5 + $0x28] sm:$0xf]
    %v110 = vld [vmem:[#allocation5 + $0x2c] sm:$0xf]
    %v111 = vld [vmem:[#allocation5 + $0x30] sm:$0xf]
    %v112 = vld [vmem:[#allocation5 + $0x34] sm:$0xf]
    %v113 = vld [vmem:[#allocation5 + $0x38] sm:$0xf]
    %v114 = vld [vmem:[#allocation5 + $0x3c] sm:$0xf]
    %v115 = vld [vmem:[%s2] sm:$0x1]
    %v117 = vperm.slane %v115, 0
    %v135 = vunpack.c.l.b16 %v99
    %v136 = vunpack.c.l.b16 %v100
    %v137 = vunpack.c.l.b16 %v101
    %v138 = vunpack.c.l.b16 %v102
    %v139 = vunpack.c.l.b16 %v103
    %v140 = vunpack.c.l.b16 %v104
    %v141 = vunpack.c.l.b16 %v105
    %v142 = vunpack.c.l.b16 %v106
    %v143 = vunpack.c.l.b16 %v107
    %v144 = vunpack.c.l.b16 %v108
    %v145 = vunpack.c.l.b16 %v109
    %v146 = vunpack.c.l.b16 %v110
    %v147 = vunpack.c.l.b16 %v111
    %v148 = vunpack.c.l.b16 %v112
    %v149 = vunpack.c.l.b16 %v113
    %v150 = vunpack.c.l.b16 %v114
    %v151 = vpack.c.b16 %v136, %v135
    %v152 = vpack.c.b16 %v138, %v137
    %v153 = vpack.c.b16 %v140, %v139
    %v154 = vpack.c.b16 %v142, %v141
    %v155 = vpack.c.b16 %v144, %v143
    %v156 = vpack.c.b16 %v146, %v145
    %v157 = vpack.c.b16 %v148, %v147
    %v158 = vpack.c.b16 %v150, %v149
    %167 = vmatpush.bf16.msra.mxu0 %v158
    %168 = vmatpush.bf16.msra.mxu0 %v157
    %169 = vmatpush.bf16.msra.mxu0 %v156
    %170 = vmatpush.bf16.msra.mxu0 %v155
    %171 = vmatpush.bf16.msra.mxu0 %v154
    %172 = vmatpush.bf16.msra.mxu0 %v153
    %173 = vmatpush.bf16.msra.mxu0 %v152
    %174 = vmatpush.bf16.msra.mxu0 %v151
    %175 = vmatmul.bf16.gmra.mxu0 %v98
    %v176 = vpop.f32.mrf.mxu0
    %v177 = vadd.f32 %v117, %v176
    %v178 = vpop.f32.mrf.mxu0
    %v179 = vadd.f32 %v117, %v178
    %180 = vdwg.mxu0
    %v181 = vmul.f32 %v177, %v177
    %v182 = vmul.f32 %v179, %v179
    %v183 = vmul.f32 %v177, %v181
    %v184 = vmul.f32 %v179, %v182
    %v185 = vmul.f32 %v183, 0.044715
    %v186 = vmul.f32 %v184, 0.044715
    %v187 = vadd.f32 %v177, %v185
    %v188 = vadd.f32 %v179, %v186
    %v189 = vmul.f32 %v187, 0.7978846
    %v190 = vmul.f32 %v188, 0.7978846
    %v191 = vtanh.pop %v189
    %v192 = vtanh.pop %v190
    %v193 = vadd.f32 %v191, 1.0
    %v194 = vadd.f32 %v192, 1.0
    %v195 = vmul.f32 %v193, 0.5
    %v196 = vmul.f32 %v194, 0.5
    %v197 = vmul.f32 %v177, %v195
    %v198 = vmul.f32 %v179, %v196
    %v199 = vpack.c.bf16 %v198, %v197
    %v200 = vld [vmem:[#allocation7] sm:$0xf]
    %v201 = vld [vmem:[#allocation7 + $0x4] sm:$0xf]
    %v202 = vld [vmem:[#allocation7 + $0x8] sm:$0xf]
    %v203 = vld [vmem:[#allocation7 + $0xc] sm:$0xf]
    %v204 = vld [vmem:[#allocation7 + $0x10] sm:$0xf]
    %v205 = vld [vmem:[#allocation7 + $0x14] sm:$0xf]
    %v206 = vld [vmem:[#allocation7 + $0x18] sm:$0xf]
    %v207 = vld [vmem:[#allocation7 + $0x1c] sm:$0xf]
    %v208 = vld [vmem:[#allocation7 + $0x20] sm:$0xf]
    %v209 = vld [vmem:[#allocation7 + $0x24] sm:$0xf]
    %v210 = vld [vmem:[#allocation7 + $0x28] sm:$0xf]
    %v211 = vld [vmem:[#allocation7 + $0x2c] sm:$0xf]
    %v212 = vld [vmem:[#allocation7 + $0x30] sm:$0xf]
    %v213 = vld [vmem:[#allocation7 + $0x34] sm:$0xf]
    %v214 = vld [vmem:[#allocation7 + $0x38] sm:$0xf]
    %v215 = vld [vmem:[#allocation7 + $0x3c] sm:$0xf]
    %v216 = vld [vmem:[%s4] sm:$0x1]
    %v218 = vperm.slane %v216, 0
    %v236 = vunpack.c.l.b16 %v200
    %v237 = vunpack.c.l.b16 %v201
    %v238 = vunpack.c.l.b16 %v202
    %v239 = vunpack.c.l.b16 %v203
    %v240 = vunpack.c.l.b16 %v204
    %v241 = vunpack.c.l.b16 %v205
    %v242 = vunpack.c.l.b16 %v206
    %v243 = vunpack.c.l.b16 %v207
    %v244 = vunpack.c.l.b16 %v208
    %v245 = vunpack.c.l.b16 %v209
    %v246 = vunpack.c.l.b16 %v210
    %v247 = vunpack.c.l.b16 %v211
    %v248 = vunpack.c.l.b16 %v212
    %v249 = vunpack.c.l.b16 %v213
    %v250 = vunpack.c.l.b16 %v214
    %v251 = vunpack.c.l.b16 %v215
    %v252 = vpack.c.b16 %v237, %v236
    %v253 = vpack.c.b16 %v239, %v238
    %v254 = vpack.c.b16 %v241, %v240
    %v255 = vpack.c.b16 %v243, %v242
    %v256 = vpack.c.b16 %v245, %v244
    %v257 = vpack.c.b16 %v247, %v246
    %v258 = vpack.c.b16 %v249, %v248
    %v259 = vpack.c.b16 %v251, %v250
    %268 = vmatpush.bf16.msra.mxu0 %v259
    %269 = vmatpush.bf16.msra.mxu0 %v258
    %270 = vmatpush.bf16.msra.mxu0 %v257
    %271 = vmatpush.bf16.msra.mxu0 %v256
    %272 = vmatpush.bf16.msra.mxu0 %v255
    %273 = vmatpush.bf16.msra.mxu0 %v254
    %274 = vmatpush.bf16.msra.mxu0 %v253
    %275 = vmatpush.bf16.msra.mxu0 %v252
    %276 = vmatmul.bf16.gmra.mxu0 %v199
    %v277 = vpop.f32.mrf.mxu0
    %v278 = vadd.f32 %v218, %v277
    %v279 = vpop.f32.mrf.mxu0
    %v280 = vadd.f32 %v218, %v279
    %281 = vdwg.mxu0
    %v282 = vadd.f32 %v96, %v278
    %v283 = vadd.f32 %v97, %v280
    %284 = vadd.xlane.f32.xlu0 %v282
    %v285 = vpop.xlane.xlu0 %284
    %286 = vadd.xlane.f32.xlu0 %v283
    %v287 = vpop.xlane.xlu0 %286
    %v288 = vrcp.pop 128.0
    %v289 = vmul.f32 128.0, %v288
    %v290 = vsub.f32 1.0, %v289
    %v291 = vmul.f32 %v288, %v290
    %v292 = vadd.f32 %v288, %v291
    %vm293 = vweird.f32 %v288
    %v294 = vsel %vm293, %v288, %v292
    %v295 = vmul.f32 %v285, %v294
    %v296 = vmul.f32 %v287, %v294
    %v297 = vsub.f32 %v282, %v295
    %v298 = vsub.f32 %v283, %v296
    %v299 = vmul.f32 %v297, %v297
    %v300 = vmul.f32 %v298, %v298
    %301 = vadd.xlane.f32.xlu0 %v299
    %v302 = vpop.xlane.xlu0 %301
    %303 = vadd.xlane.f32.xlu0 %v300
    %v304 = vpop.xlane.xlu0 %303
    %v305 = vmul.f32 %v302, %v294
    %v306 = vmul.f32 %v304, %v294
    %v307 = vadd.f32 %v305, 1e-12
    %v308 = vadd.f32 %v306, 1e-12
    %v309 = vrsqrt.pop %v307
    %v310 = vmul.f32 %v309, %v307
    %v311 = vmul.f32 %v310, %v309
    %v312 = vmul.f32 0.5, %v311
    %v313 = vsub.f32 1.5, %v312
    %v314 = vmul.f32 %v309, %v313
    %vm315 = vweird.f32 %v307
    %vm316 = vweird.f32 %v309
    %vm317 = vmor %vm315, %vm316
    %v318 = vsel %vm317, %v309, %v314
    %v319 = vrsqrt.pop %v308
    %v320 = vmul.f32 %v319, %v308
    %v321 = vmul.f32 %v320, %v319
    %v322 = vmul.f32 0.5, %v321
    %v323 = vsub.f32 1.5, %v322
    %v324 = vmul.f32 %v319, %v323
    %vm325 = vweird.f32 %v308
    %vm326 = vweird.f32 %v319
    %vm327 = vmor %vm325, %vm326
    %v328 = vsel %vm327, %v319, %v324
    %v329 = vmul.f32 %v297, %v318
    %v330 = vmul.f32 %v298, %v328
    %v331 = vld [vmem:[%s5] sm:$0x1]
    %v333 = vperm.slane %v331, 0
    %v335 = vmul.f32 %v329, %v333
    %v336 = vmul.f32 %v330, %v333
    %v337 = vld [vmem:[%s6] sm:$0x1]
    %v339 = vperm.slane %v337, 0
    %v341 = vadd.f32 %v335, %v339
    %v342 = vadd.f32 %v336, %v339
    %v343 = vpack.c.bf16 %v342, %v341
    %v344 = vld [vmem:[#allocation8] sm:$0xf]
    %v345 = vld [vmem:[#allocation8 + $0x4] sm:$0xf]
    %v346 = vld [vmem:[#allocation8 + $0x8] sm:$0xf]
    %v347 = vld [vmem:[#allocation8 + $0xc] sm:$0xf]
    %v348 = vld [vmem:[#allocation8 + $0x10] sm:$0xf]
    %v349 = vld [vmem:[#allocation8 + $0x14] sm:$0xf]
    %v350 = vld [vmem:[#allocation8 + $0x18] sm:$0xf]
    %v351 = vld [vmem:[#allocation8 + $0x1c] sm:$0xf]
    %v352 = vld [vmem:[#allocation8 + $0x20] sm:$0xf]
    %v353 = vld [vmem:[#allocation8 + $0x24] sm:$0xf]
    %v354 = vld [vmem:[#allocation8 + $0x28] sm:$0xf]
    %v355 = vld [vmem:[#allocation8 + $0x2c] sm:$0xf]
    %v356 = vld [vmem:[#allocation8 + $0x30] sm:$0xf]
    %v357 = vld [vmem:[#allocation8 + $0x34] sm:$0xf]
    %v358 = vld [vmem:[#allocation8 + $0x38] sm:$0xf]
    %v359 = vld [vmem:[#allocation8 + $0x3c] sm:$0xf]
    %v360 = vld [vmem:[%s8] sm:$0x1]
    %v362 = vperm.slane %v360, 0
    %v380 = vunpack.c.l.b16 %v344
    %v381 = vunpack.c.l.b16 %v345
    %v382 = vunpack.c.l.b16 %v346
    %v383 = vunpack.c.l.b16 %v347
    %v384 = vunpack.c.l.b16 %v348
    %v385 = vunpack.c.l.b16 %v349
    %v386 = vunpack.c.l.b16 %v350
    %v387 = vunpack.c.l.b16 %v351
    %v388 = vunpack.c.l.b16 %v352
    %v389 = vunpack.c.l.b16 %v353
    %v390 = vunpack.c.l.b16 %v354
    %v391 = vunpack.c.l.b16 %v355
    %v392 = vunpack.c.l.b16 %v356
    %v393 = vunpack.c.l.b16 %v357
    %v394 = vunpack.c.l.b16 %v358
    %v395 = vunpack.c.l.b16 %v359
    %v396 = vpack.c.b16 %v381, %v380
    %v397 = vpack.c.b16 %v383, %v382
    %v398 = vpack.c.b16 %v385, %v384
    %v399 = vpack.c.b16 %v387, %v386
    %v400 = vpack.c.b16 %v389, %v388
    %v401 = vpack.c.b16 %v391, %v390
    %v402 = vpack.c.b16 %v393, %v392
    %v403 = vpack.c.b16 %v395, %v394
    %412 = vmatpush.bf16.msra.mxu0 %v403
    %413 = vmatpush.bf16.msra.mxu0 %v402
    %414 = vmatpush.bf16.msra.mxu0 %v401
    %415 = vmatpush.bf16.msra.mxu0 %v400
    %416 = vmatpush.bf16.msra.mxu0 %v399
    %417 = vmatpush.bf16.msra.mxu0 %v398
    %418 = vmatpush.bf16.msra.mxu0 %v397
    %419 = vmatpush.bf16.msra.mxu0 %v396
    %420 = vmatmul.bf16.gmra.mxu0 %v343
    %v421 = vpop.f32.mrf.mxu0
    %v422 = vadd.f32 %v362, %v421
    %v423 = vpop.f32.mrf.mxu0
    %v424 = vadd.f32 %v362, %v423
    %425 = vdwg.mxu0
    %v426 = vmul.f32 %v422, 0.5
    %v427 = vmul.f32 %v424, 0.5
    %v428 = vtanh.pop %v426
    %v429 = vtanh.pop %v427
    %v430 = vadd.f32 %v428, 1.0
    %v431 = vadd.f32 %v429, 1.0
    %v432 = vmul.f32 %v430, 0.5
    %v433 = vmul.f32 %v431, 0.5
    %v434 = vmin.f32 %v432, 1.0
    %v435 = vmin.f32 %v433, 1.0
    %v436 = vmul.f32 %v341, %v434
    %v437 = vmul.f32 %v342, %v435
    %438 = vst [vmem:[#allocation10] sm:$0xff] %v436
    %439 = vst [vmem:[#allocation10 + $0x8] sm:$0xff] %v437
    // Predicated region
    $region54: #{tpu_custom_call.1} parent=1 // pred_check
      _
    $region55: #{tpu_custom_call.1} parent=1 // pred_check_branch
      %441 = sbr.rel (0) target = $region57
    $region56: #{tpu_custom_call.1} parent=1 // pred_region
      %443 = vsyncadd [#allocation4], 0
      %s444 = sshll.u32 [#allocation10], 4
      %s445 = int_to_ptr.vmem [resolvable:$true] %s444
      %s446 = sshll.u32 %s9, 4
      %s447 = int_to_ptr.hbm [resolvable:$true] %s446
      %452 = dma.vmem_to_hbm [thread:$0]  %s445, 256, %s447, [#allocation4], 128, 128, 8
    $region57: #{tpu_custom_call.1} parent=1 // pred_fallthru
      _
    // Predicated region
    $region58: #{tpu_custom_call.1} parent=1 // pred_check
      _
    $region59: #{tpu_custom_call.1} parent=1 // pred_check_branch
      %454 = sbr.rel (0) target = $region61
    $region60: #{tpu_custom_call.1} parent=1 // pred_region
      %456 = dma.done [#allocation4], 256
    $region61: #{tpu_custom_call.1} parent=1 // pred_fallthru
      _
    %457 = vsyncpa [#allocation3], 1
    %458 = vsyncpa [#allocation6], 1
    %459 = vsyncpa [#allocation9], 1
    %460 = vsyncpa [#allocation4], 1

</llo_original>
